<compile_context>
chip_gen: v7x
topology: tpu7x:2x2x1
jax: 0.10.0
libtpu: 0.0.40
codegen_flags: <defaults>
</compile_context>

<pallas_src>
import jax
import jax.numpy as jnp
from jax.experimental import pallas as pl
from jax.experimental.pallas import tpu as pltpu


# ----------------------------------------------------------------------------
# Kernel: out = x + pe   (2-D tiles; pe broadcast along the sublane/seq axis)
# ----------------------------------------------------------------------------
def add_pe_kernel(x_ref, pe_ref, o_ref):
    # x_ref : (TS, N)   flattened (batch * d_model) on the lane axis
    # pe_ref: (1,  N)   VMEM-resident across all grid steps (constant index_map)
    # o_ref : (TS, N)
    o_ref[...] = x_ref[...] + pe_ref[...]
    # TODO(synk): training-mode dropout (pltpu.prng_seed + prng_random_bits
    # mask fused into this add) not implemented; eval-mode dropout == identity.


def _choose_seq_tile(S, row_bytes, target_bytes=2 << 20):
    """Pick a seq-axis tile: ~2 MiB (HBM-roofline-saturating on all chips),
    multiple of 8 sublanes, preferably an exact divisor of S, and never a
    forced split when the whole array fits one tile."""
    ts = max(1, target_bytes // max(row_bytes, 1))
    if ts >= S:
        return S                      # single grid step — no artificial split
    ts = max(8, (ts // 8) * 8)        # sublane-aligned
    if ts >= S:
        return S
    # Prefer the largest divisor of S that is a multiple of 8 and <= ts, so the
    # final block is never a masked partial block.
    cand = ts
    while cand >= 8:
        if S % cand == 0:
            return cand
        cand -= 8
    return ts                         # fall back: last block partially masked


def learnable_positional_encoding(x, pe):
    """x: (S, P, D), pe: (P, D)  ->  (S, P, D).  out = x + pe (eval dropout)."""
    S, P, D = x.shape
    assert pe.shape == (P, D), (
        "PyTorch broadcast of pe against x requires pe.shape == x.shape[1:] "
        "(i.e. max_len == batch size)"
    )
    N = P * D
    itemsize = jnp.dtype(x.dtype).itemsize
    row_bytes = N * itemsize

    # Flatten trailing dims: lane-dense last axis, sublane broadcast for pe.
    x2 = x.reshape(S, N)
    pe2 = pe.reshape(1, N)

    ts = _choose_seq_tile(S, row_bytes)
    grid = (pl.cdiv(S, ts),)

    # Explicit VMEM budget: double-buffered x tile + double-buffered out tile
    # + (double-buffered) pe, with ~50% headroom.  Capped well under v7x's
    # 64 MiB physical VMEM; floor keeps room for internal scratch.
    tile_bytes = ts * row_bytes
    pe_bytes = N * itemsize
    vmem_needed = 2 * tile_bytes + 2 * tile_bytes + 2 * pe_bytes
    vmem_limit = max(4 << 20, min(int(1.5 * vmem_needed) + (1 << 20), 48 << 20))

    out2 = pl.pallas_call(
        add_pe_kernel,
        out_shape=jax.ShapeDtypeStruct((S, N), x.dtype),
        grid=grid,
        in_specs=[
            pl.BlockSpec((ts, N), lambda i: (i, 0)),   # x tile
            pl.BlockSpec((1, N), lambda i: (0, 0)),    # pe, VMEM-resident
        ],
        out_specs=pl.BlockSpec((ts, N), lambda i: (i, 0)),
        compiler_params=pltpu.CompilerParams(
            dimension_semantics=("parallel",),
            vmem_limit_bytes=vmem_limit,
        ),
    )(x2, pe2)

    return out2.reshape(S, P, D)


# ----------------------------------------------------------------------------
# Demo / self-test
# ----------------------------------------------------------------------------
if __name__ == "__main__":
    key = jax.random.PRNGKey(0)
    kx, kp = jax.random.split(key)

    # Shapes consistent with the module's forward:
    #   x: [sequence length, batch size, embed dim], pe: [max_len, embed dim]
    #   (the literal broadcast in forward() implies max_len == batch size)
    S, B, D = 16, 8, 128
    max_len = B

    x = jax.random.normal(kx, (S, B, D), jnp.float32)
    pe = jax.random.uniform(kp, (max_len, D), jnp.float32,
                            minval=-0.02, maxval=0.02)

    out = learnable_positional_encoding(x, pe)
    out = jax.block_until_ready(out)

    # Reference check (eval-mode dropout == identity).
    ref = x + pe[None, :, :]
    assert out.shape == (S, B, D)
    assert jnp.allclose(out, ref, atol=1e-6, rtol=1e-6)

    print("KERNEL_OK")
</pallas_src>

<mosaic_0001>
module attributes {stable_mosaic.version = 11 : i64} {
  func.func @add_pe_kernel(%arg0: i32, %arg1: memref<16x1024xf32, #tpu.memory_space<vmem>>, %arg2: memref<1x1024xf32, #tpu.memory_space<vmem>>, %arg3: memref<16x1024xf32, #tpu.memory_space<vmem>>) attributes {dimension_semantics = [#tpu.dimension_semantics<parallel>], iteration_bounds = array<i64: 1>, scalar_prefetch = 0 : i64, scratch_operands = 0 : i64, tpu.core_type = #tpu.core_type<tc>, window_params = [{transform_indices = @transform_0, window_bounds = array<i64: 16, 1024>}, {pipeline_mode = #tpu.pipeline_mode<synchronous>, transform_indices = @transform_1, window_bounds = array<i64: 1, 1024>}, {transform_indices = @transform_2, window_bounds = array<i64: 16, 1024>}]} {
    %c0 = arith.constant 0 : index
    %c0_0 = arith.constant 0 : index
    %0 = vector.load %arg1[%c0, %c0_0] : memref<16x1024xf32, #tpu.memory_space<vmem>>, vector<16x1024xf32>
    %c0_1 = arith.constant 0 : index
    %c0_2 = arith.constant 0 : index
    %1 = vector.load %arg2[%c0_1, %c0_2] : memref<1x1024xf32, #tpu.memory_space<vmem>>, vector<1x1024xf32>
    %2 = vector.broadcast %1 : vector<1x1024xf32> to vector<16x1024xf32>
    %3 = arith.addf %0, %2 : vector<16x1024xf32>
    %c0_3 = arith.constant 0 : index
    %c0_4 = arith.constant 0 : index
    %4 = vector.load %arg3[%c0_3, %c0_4] : memref<16x1024xf32, #tpu.memory_space<vmem>>, vector<16x1024xf32>
    tpu.vector_store %arg3[%c0_3, %c0_4], %3 {strides = array<i32>} : memref<16x1024xf32, #tpu.memory_space<vmem>>, vector<16x1024xf32>,
    return
  }
  func.func @transform_0(%arg0: i32) -> (i32, i32) {
    %c0_i32 = arith.constant 0 : i32
    %c0_i32_0 = arith.constant 0 : i32
    return %arg0, %c0_i32 : i32, i32
  }
  func.func @transform_1(%arg0: i32) -> (i32, i32) {
    %c0_i32 = arith.constant 0 : i32
    %c0_i32_0 = arith.constant 0 : i32
    %c0_i32_1 = arith.constant 0 : i32
    return %c0_i32, %c0_i32_0 : i32, i32
  }
  func.func @transform_2(%arg0: i32) -> (i32, i32) {
    %c0_i32 = arith.constant 0 : i32
    %c0_i32_0 = arith.constant 0 : i32
    return %arg0, %c0_i32 : i32, i32
  }
}

</mosaic_0001>

<llo_original>
// kernel: tpu_custom_call.1
$region0: #{tpu_custom_call.1}
  #allocation0 [shape = 'u32[]', space=smem, size = 0x4, offset = 0x4, fixed_abs, tag = 'smem constant byte address 0x4 - core index']
  #allocation1 [shape = 'u32[144,128]{1,0:T(1,128)}', space=vmem, size = 0x12000, scoped, tag = 'internal scratch']
  %s0 = inlined_call_operand.hbm [shape: f32[16,1024], index: 0, kind: input, shape index: {}]
  %s1 = inlined_call_operand.hbm [shape: f32[1,1024], index: 1, kind: input, shape index: {}]
  %s2 = inlined_call_operand.hbm [shape: f32[16,1024], index: 2, kind: output, shape index: {}]
  %s3 = sld [smem:[#allocation0]]
  $region26: #{tpu_custom_call.1} parent=0
    _
  %s5 = ssub.s32 1, %s3
  %s6 = scalar_select 0, %s5, %s3
  $region1: #{tpu_custom_call.1} parent=0
    #allocation2 [shape = 'u8[65536]{0}', space=vmem, size = 0x10000, scoped, tag = 'input window, operand 0, single buffered']
    #allocation3 [shape = 's32[1]{0}', space=sflag, size = 0x4, scoped, tag = 'scoped memory for tpu_custom_call.1']
    #allocation4 [shape = 's32[1]{0}', space=sflag, size = 0x4, scoped, tag = 'scoped memory for tpu_custom_call.1']
    #allocation5 [shape = 'u8[4096]{0}', space=vmem, size = 0x1000, scoped, tag = 'input window, operand 1, single buffered']
    #allocation6 [shape = 's32[1]{0}', space=sflag, size = 0x4, scoped, tag = 'scoped memory for tpu_custom_call.1']
    #allocation7 [shape = 'u8[65536]{0}', space=vmem, size = 0x10000, scoped, tag = 'output window, operand 0, single buffered']
    %7 = vsyncpa [#allocation3], 0
    %8 = vsyncpa [#allocation6], 0
    %9 = vsyncpa [#allocation4], 0
    // Predicated region
    $region2: #{tpu_custom_call.1} parent=1 // pred_check
      _
    $region3: #{tpu_custom_call.1} parent=1 // pred_check_branch
      %11 = sbr.rel (0) target = $region5
    $region4: #{tpu_custom_call.1} parent=1 // pred_region
      %s13 = ssub.s32 2048, 2048
      %14 = vsyncadd [#allocation3], %s13
      %s15 = sshll.u32 [#allocation2], 4
      %s16 = int_to_ptr.vmem [resolvable:$true] %s15
      %21 = dma.hbm_to_vmem [thread:$0]  %s0, 2048, %s16, [#allocation3], 1024, 1024, 64
    $region5: #{tpu_custom_call.1} parent=1 // pred_fallthru
      _
    // Predicated region
    $region6: #{tpu_custom_call.1} parent=1 // pred_check
      _
    $region7: #{tpu_custom_call.1} parent=1 // pred_check_branch
      %23 = sbr.rel (0) target = $region9
    $region8: #{tpu_custom_call.1} parent=1 // pred_region
      %s25 = ssub.s32 128, 128
      %26 = vsyncadd [#allocation6], %s25
      %s28 = sshll.u32 [#allocation5], 4
      %s29 = int_to_ptr.vmem [resolvable:$true] %s28
      %31 = dma.hbm_to_vmem [thread:$0]  %s1, 128, %s29, [#allocation6]
    $region9: #{tpu_custom_call.1} parent=1 // pred_fallthru
      _
    // Predicated region
    $region10: #{tpu_custom_call.1} parent=1 // pred_check
      _
    $region11: #{tpu_custom_call.1} parent=1 // pred_check_branch
      %33 = sbr.rel (0) target = $region13
    $region12: #{tpu_custom_call.1} parent=1 // pred_region
      %34 = dma.done [#allocation3], 2048
    $region13: #{tpu_custom_call.1} parent=1 // pred_fallthru
      _
    // Predicated region
    $region14: #{tpu_custom_call.1} parent=1 // pred_check
      _
    $region15: #{tpu_custom_call.1} parent=1 // pred_check_branch
      %36 = sbr.rel (0) target = $region17
    $region16: #{tpu_custom_call.1} parent=1 // pred_region
      %37 = dma.done [#allocation6], 128
    $region17: #{tpu_custom_call.1} parent=1 // pred_fallthru
      _
    %v38 = vld [vmem:[#allocation2] sm:$0xff]
    %v39 = vld [vmem:[#allocation2 + $0x8] sm:$0xff]
    %v40 = vld [vmem:[#allocation2 + $0x10] sm:$0xff]
    %v41 = vld [vmem:[#allocation2 + $0x18] sm:$0xff]
    %v42 = vld [vmem:[#allocation2 + $0x20] sm:$0xff]
    %v43 = vld [vmem:[#allocation2 + $0x28] sm:$0xff]
    %v44 = vld [vmem:[#allocation2 + $0x30] sm:$0xff]
    %v45 = vld [vmem:[#allocation2 + $0x38] sm:$0xff]
    %v46 = vld [vmem:[#allocation2 + $0x40] sm:$0xff]
    %v47 = vld [vmem:[#allocation2 + $0x48] sm:$0xff]
    %v48 = vld [vmem:[#allocation2 + $0x50] sm:$0xff]
    %v49 = vld [vmem:[#allocation2 + $0x58] sm:$0xff]
    %v50 = vld [vmem:[#allocation2 + $0x60] sm:$0xff]
    %v51 = vld [vmem:[#allocation2 + $0x68] sm:$0xff]
    %v52 = vld [vmem:[#allocation2 + $0x70] sm:$0xff]
    %v53 = vld [vmem:[#allocation2 + $0x78] sm:$0xff]
    %v54 = vld [vmem:[#allocation5] sm:$0xff]
    %v56 = vlaneseq
    %v57 = vshrl.u32 %v56, 7
    %v58 = vsub.s32 0, %v57
    %v59 = vrot.slane %v54, %v58
    %v60 = vlaneseq
    %v61 = vshrl.u32 %v60, 7
    %v62 = vsub.s32 1, %v61
    %v63 = vrot.slane %v54, %v62
    %v64 = vlaneseq
    %v65 = vshrl.u32 %v64, 7
    %v66 = vsub.s32 2, %v65
    %v67 = vrot.slane %v54, %v66
    %v68 = vlaneseq
    %v69 = vshrl.u32 %v68, 7
    %v70 = vsub.s32 3, %v69
    %v71 = vrot.slane %v54, %v70
    %v72 = vlaneseq
    %v73 = vshrl.u32 %v72, 7
    %v74 = vsub.s32 4, %v73
    %v75 = vrot.slane %v54, %v74
    %v76 = vlaneseq
    %v77 = vshrl.u32 %v76, 7
    %v78 = vsub.s32 5, %v77
    %v79 = vrot.slane %v54, %v78
    %v80 = vlaneseq
    %v81 = vshrl.u32 %v80, 7
    %v82 = vsub.s32 6, %v81
    %v83 = vrot.slane %v54, %v82
    %v84 = vlaneseq
    %v85 = vshrl.u32 %v84, 7
    %v86 = vsub.s32 7, %v85
    %v87 = vrot.slane %v54, %v86
    %v96 = vadd.f32 %v38, %v59
    %v97 = vadd.f32 %v39, %v63
    %v98 = vadd.f32 %v40, %v67
    %v99 = vadd.f32 %v41, %v71
    %v100 = vadd.f32 %v42, %v75
    %v101 = vadd.f32 %v43, %v79
    %v102 = vadd.f32 %v44, %v83
    %v103 = vadd.f32 %v45, %v87
    %v104 = vadd.f32 %v46, %v59
    %v105 = vadd.f32 %v47, %v63
    %v106 = vadd.f32 %v48, %v67
    %v107 = vadd.f32 %v49, %v71
    %v108 = vadd.f32 %v50, %v75
    %v109 = vadd.f32 %v51, %v79
    %v110 = vadd.f32 %v52, %v83
    %v111 = vadd.f32 %v53, %v87
    %112 = vst [vmem:[#allocation7] sm:$0xff] %v96
    %113 = vst [vmem:[#allocation7 + $0x8] sm:$0xff] %v97
    %114 = vst [vmem:[#allocation7 + $0x10] sm:$0xff] %v98
    %115 = vst [vmem:[#allocation7 + $0x18] sm:$0xff] %v99
    %116 = vst [vmem:[#allocation7 + $0x20] sm:$0xff] %v100
    %117 = vst [vmem:[#allocation7 + $0x28] sm:$0xff] %v101
    %118 = vst [vmem:[#allocation7 + $0x30] sm:$0xff] %v102
    %119 = vst [vmem:[#allocation7 + $0x38] sm:$0xff] %v103
    %120 = vst [vmem:[#allocation7 + $0x40] sm:$0xff] %v104
    %121 = vst [vmem:[#allocation7 + $0x48] sm:$0xff] %v105
    %122 = vst [vmem:[#allocation7 + $0x50] sm:$0xff] %v106
    %123 = vst [vmem:[#allocation7 + $0x58] sm:$0xff] %v107
    %124 = vst [vmem:[#allocation7 + $0x60] sm:$0xff] %v108
    %125 = vst [vmem:[#allocation7 + $0x68] sm:$0xff] %v109
    %126 = vst [vmem:[#allocation7 + $0x70] sm:$0xff] %v110
    %127 = vst [vmem:[#allocation7 + $0x78] sm:$0xff] %v111
    // Predicated region
    $region18: #{tpu_custom_call.1} parent=1 // pred_check
      _
    $region19: #{tpu_custom_call.1} parent=1 // pred_check_branch
      %129 = sbr.rel (0) target = $region21
    $region20: #{tpu_custom_call.1} parent=1 // pred_region
      %s131 = ssub.s32 2048, 2048
      %132 = vsyncadd [#allocation4], %s131
      %s133 = sshll.u32 [#allocation7], 4
      %s134 = int_to_ptr.vmem [resolvable:$true] %s133
      %139 = dma.vmem_to_hbm [thread:$0]  %s134, 2048, %s2, [#allocation4], 1024, 1024, 64
    $region21: #{tpu_custom_call.1} parent=1 // pred_fallthru
      _
    // Predicated region
    $region22: #{tpu_custom_call.1} parent=1 // pred_check
      _
    $region23: #{tpu_custom_call.1} parent=1 // pred_check_branch
      %141 = sbr.rel (0) target = $region25
    $region24: #{tpu_custom_call.1} parent=1 // pred_region
      %142 = dma.done [#allocation4], 2048
    $region25: #{tpu_custom_call.1} parent=1 // pred_fallthru
      _
    %143 = vsyncpa [#allocation3], 1
    %144 = vsyncpa [#allocation6], 1
    %145 = vsyncpa [#allocation4], 1

</llo_original>
